<compile_context>
chip_gen: v7x
topology: tpu7x:2x2x1
jax: 0.10.0
libtpu: 0.0.40
codegen_flags: <defaults>
</compile_context>

<pallas_src>
import functools

import jax
import jax.numpy as jnp
from jax import lax
from jax.experimental import pallas as pl
from jax.experimental.pallas import tpu as pltpu


def _round_up(x, m):
    return ((x + m - 1) // m) * m


def _contrastive_loss_kernel(zi_ref, zj_ref, out_ref, *, inv_temperature,
                             block_rows, diag_from_logits):
    i = pl.program_id(0)

    zi = zi_ref[...]                 # (tm, Dp)  native dtype (bf16 stays bf16)
    zj = zj_ref[...]                 # (B,  Dp)  native dtype, VMEM-resident

    # Fold 1/temperature into the small operand: O(tm*Dp), not O(tm*B).
    # Multiply in f32 so the scale itself is not pre-quantized for bf16 inputs.
    zi_scaled = (zi.astype(jnp.float32) *
                 jnp.float32(inv_temperature)).astype(zi.dtype)

    # logits[r, c] = <zi_scaled[r], zj[c]> -- NT contraction over D straight on
    # the MXU (no explicit z_j transpose), f32 accumulation.
    logits = lax.dot_general(
        zi_scaled, zj,
        dimension_numbers=(((1,), (1,)), ((), ())),
        preferred_element_type=jnp.float32)                            # (tm, B)

    # Numerically stable logsumexp over the class (last) axis.
    m = jnp.max(logits, axis=-1, keepdims=True)                        # (tm, 1)
    lse = jnp.log(jnp.sum(jnp.exp(logits - m), axis=-1, keepdims=True)) + m

    if diag_from_logits:
        # Exact MXU diagonal logits[r, i*tm + r] via an iota equality mask on
        # values already in vregs (same rounding as the lse path).  Rows whose
        # global index exceeds the real batch (padding) match no column -> 0,
        # and are discarded by the wrapper.
        rows = lax.broadcasted_iota(jnp.int32, logits.shape, 0)
        cols = lax.broadcasted_iota(jnp.int32, logits.shape, 1)
        mask = cols == rows + i * block_rows
        diag = jnp.sum(jnp.where(mask, logits, 0.0), axis=-1, keepdims=True)
    else:
        # O(tm*Dp) row-wise dot with the matching z_j rows (only used when the
        # batch divides tm exactly, so the slice is always in bounds).
        start = pl.multiple_of(i * block_rows, block_rows)
        zj_rows = zj_ref[pl.ds(start, block_rows), :]                  # (tm, Dp)
        diag = jnp.sum(zi_scaled.astype(jnp.float32) *
                       zj_rows.astype(jnp.float32),
                       axis=-1, keepdims=True)                         # (tm, 1)

    out_ref[...] = lse - diag                                          # (tm, 1)


def _vmem_bytes(tm, n_cols, dim_padded, itemsize):
    """Rough live-VMEM estimate for a given row tile."""
    zi_blocks = 2 * tm * dim_padded * itemsize          # double-buffered z_i rows
    zj_resident = n_cols * dim_padded * itemsize        # single-buffered z_j
    logits_and_tmps = 4 * tm * max(n_cols, 128) * 4     # logits + softmax temps
    out_blocks = 2 * tm * 128 * 4                       # (tm, 1) padded to lanes
    return zi_blocks + zj_resident + logits_and_tmps + out_blocks + (2 << 20)


def _vmem_budget_bytes():
    """Usable VMEM budget for this generation (don't clamp v5e/v6e to 64 MiB)."""
    try:
        cap = int(pltpu.get_tpu_info().vmem_capacity_bytes)
    except Exception:  # pragma: no cover - defensive
        kind = ""
        try:
            kind = jax.devices()[0].device_kind.lower()
        except Exception:
            pass
        cap = (64 << 20) if "7" in kind else (128 << 20)   # v7x: 64 MiB / TC
    return int(cap * 0.85)


def _pick_row_tile(batch_size, n_cols, dim_padded, itemsize, vmem_budget):
    """Largest row tile that fits VMEM without excessive batch padding."""
    # Sublane packing minimums: 8 rows (f32), 16 (bf16), 32 (int8/fp8).
    min_tm = 32 if itemsize == 1 else (16 if itemsize == 2 else 8)
    b_ceil = _round_up(batch_size, min_tm)
    cands = []
    for c in (512, 256, 128, 64, 32, 16, 8):
        if c < min_tm:
            continue
        c = min(c, b_ceil)
        if c not in cands:
            cands.append(c)                              # descending
    fitting = [c for c in cands
               if _vmem_bytes(c, n_cols, dim_padded, itemsize) <= vmem_budget]
    if not fitting:
        # TODO(synk): column-blocked (flash-style) online logsumexp once even
        # the smallest row tile's (tm, B) logits slab no longer fits VMEM.
        return cands[-1]
    max_rows = max(b_ceil, int(batch_size * 1.25))
    for c in fitting:            # prefer the largest tile with <= ~25% padding
        if _round_up(batch_size, c) <= max_rows:
            return c
    return fitting[-1]


def contrastive_learning_loss(z_i, z_j, temperature=0.5):
    """JAX/Pallas equivalent of ContrastiveLearningLoss(temperature)(z_i, z_j)."""
    batch_size, dim = z_i.shape
    assert z_j.shape == (batch_size, dim)
    itemsize = jnp.dtype(z_i.dtype).itemsize

    # Zero-pad the feature dim to a multiple of 128 lanes (padding contributes
    # exactly 0 to every dot product) so MXU/VPU lanes stay dense for small D.
    dim_padded = _round_up(dim, 128)
    if dim_padded != dim:
        z_i = jnp.pad(z_i, ((0, 0), (0, dim_padded - dim)))
        z_j = jnp.pad(z_j, ((0, 0), (0, dim_padded - dim)))

    vmem_budget = _vmem_budget_bytes()
    tm = _pick_row_tile(batch_size, batch_size, dim_padded, itemsize, vmem_budget)

    # Pad z_i rows (queries) to a multiple of tm; padded rows are discarded in
    # the final mean.  z_j (the class set) is NOT padded, so the softmax
    # normalization is unchanged.
    b_padded = _round_up(batch_size, tm)
    num_row_blocks = b_padded // tm
    if b_padded != batch_size:
        z_i = jnp.pad(z_i, ((0, b_padded - batch_size), (0, 0)))

    # Use the exact MXU-logits diagonal when it's cheap (B <= Dp) or required
    # for correctness (row-padded batch); otherwise recompute O(tm*Dp).
    diag_from_logits = (dim_padded >= batch_size) or (batch_size % tm != 0)

    vmem_est = _vmem_bytes(tm, batch_size, dim_padded, itemsize)
    vmem_limit = int(min(vmem_budget, max(vmem_est, 32 << 20)))

    cost = pl.CostEstimate(
        flops=2 * b_padded * batch_size * dim_padded,
        transcendentals=b_padded * batch_size,
        bytes_accessed=(b_padded + batch_size) * dim_padded * itemsize
                       + b_padded * 4)

    kernel = functools.partial(
        _contrastive_loss_kernel,
        inv_temperature=float(1.0 / temperature),
        block_rows=tm,
        diag_from_logits=diag_from_logits)

    per_row = pl.pallas_call(
        kernel,
        out_shape=jax.ShapeDtypeStruct((b_padded, 1), jnp.float32),
        grid_spec=pltpu.PrefetchScalarGridSpec(
            num_scalar_prefetch=0,
            grid=(num_row_blocks,),
            in_specs=[
                # z_i row blocks: default double-buffered pipeline.
                pl.BlockSpec((tm, dim_padded), lambda i: (i, 0)),
                # z_j: constant block, fetched once -> single buffer.
                pl.BlockSpec((batch_size, dim_padded), lambda i: (0, 0),
                             pipeline_mode=pl.Buffered(1)),
            ],
            out_specs=pl.BlockSpec((tm, 1), lambda i: (i, 0)),
        ),
        # Each row block writes its own output rows independently -> parallel
        # (lets Mosaic shard the axis across both v7x TensorCores).
        compiler_params=pltpu.CompilerParams(
            dimension_semantics=("parallel",),
            vmem_limit_bytes=vmem_limit),
        cost_estimate=cost,
    )(z_i, z_j)

    return jnp.sum(per_row[:batch_size, 0]) / batch_size


def _reference_loss(z_i, z_j, temperature=0.5):
    logits = (z_i.astype(jnp.float32) @ z_j.astype(jnp.float32).T) / temperature
    lse = jax.scipy.special.logsumexp(logits, axis=-1)
    diag = jnp.diagonal(logits)
    return jnp.mean(lse - diag)


if __name__ == "__main__":
    key = jax.random.PRNGKey(0)
    k1, k2, k3, k4 = jax.random.split(key, 4)

    # Small demo shape matching the module (batch of 8 embeddings, dim 32).
    B, D = 8, 32
    z_i = jax.random.normal(k1, (B, D), dtype=jnp.float32)
    z_j = jax.random.normal(k2, (B, D), dtype=jnp.float32)

    loss = jax.block_until_ready(contrastive_learning_loss(z_i, z_j, temperature=0.5))
    ref = jax.block_until_ready(_reference_loss(z_i, z_j, temperature=0.5))
    assert jnp.allclose(loss, ref, rtol=1e-5, atol=1e-5), (loss, ref)

    # Secondary check exercising the larger-tile / row-dot diagonal path.
    B2, D2 = 512, 64
    z_i2 = jax.random.normal(k3, (B2, D2), dtype=jnp.float32)
    z_j2 = jax.random.normal(k4, (B2, D2), dtype=jnp.float32)
    loss2 = jax.block_until_ready(contrastive_learning_loss(z_i2, z_j2, temperature=0.5))
    ref2 = jax.block_until_ready(_reference_loss(z_i2, z_j2, temperature=0.5))
    # Looser tolerance: MXU vs XLA matmul rounding at larger logit magnitudes.
    assert jnp.allclose(loss2, ref2, rtol=1e-3, atol=1e-3), (loss2, ref2)

    print("KERNEL_OK")
</pallas_src>

<mosaic_0001>
module attributes {stable_mosaic.version = 11 : i64} {
  func.func @_contrastive_loss_kernel(%arg0: i32, %arg1: memref<8x128xf32, #tpu.memory_space<vmem>>, %arg2: memref<8x128xf32, #tpu.memory_space<vmem>>, %arg3: memref<8x1xf32, #tpu.memory_space<vmem>>) attributes {dimension_semantics = [#tpu.dimension_semantics<parallel>], iteration_bounds = array<i64: 1>, scalar_prefetch = 0 : i64, scratch_operands = 0 : i64, tpu.core_type = #tpu.core_type<tc>, window_params = [{transform_indices = @transform_0, window_bounds = array<i64: 8, 128>}, {pipeline_mode = #tpu.pipeline_mode<synchronous>, transform_indices = @transform_1, window_bounds = array<i64: 8, 128>}, {transform_indices = @transform_2, window_bounds = array<i64: 8, 1>}]} {
    %c0 = arith.constant 0 : index
    %c0_0 = arith.constant 0 : index
    %0 = vector.load %arg1[%c0, %c0_0] : memref<8x128xf32, #tpu.memory_space<vmem>>, vector<8x128xf32>
    %c0_1 = arith.constant 0 : index
    %c0_2 = arith.constant 0 : index
    %1 = vector.load %arg2[%c0_1, %c0_2] : memref<8x128xf32, #tpu.memory_space<vmem>>, vector<8x128xf32>
    %cst = arith.constant 2.000000e+00 : f32
    %2 = vector.broadcast %cst : f32 to vector<8x128xf32>
    %3 = arith.mulf %0, %2 : vector<8x128xf32>
    %cst_3 = arith.constant dense<0.000000e+00> : vector<8x8xf32>
    %4 = tpu.matmul %3, %1, %cst_3 {dimension_numbers = #tpu.dot_dimension_numbers<[1], [1], [0], [0], [0, 0, 1, 0], [], []>} : vector<8x128xf32>, vector<8x128xf32>, vector<8x8xf32> -> vector<8x8xf32>
    %cst_4 = arith.constant dense<0xFF800000> : vector<8xf32>
    %5 = vector.multi_reduction <maximumf>, %4, %cst_4 [1] : vector<8x8xf32> to vector<8xf32>
    %6 = vector.shape_cast %5 : vector<8xf32> to vector<8x1xf32>
    %7 = vector.broadcast %6 : vector<8x1xf32> to vector<8x8xf32>
    %8 = arith.subf %4, %7 : vector<8x8xf32>
    %9 = math.exp %8 : vector<8x8xf32>
    %cst_5 = arith.constant dense<0.000000e+00> : vector<8xf32>
    %10 = vector.multi_reduction <add>, %9, %cst_5 [1] : vector<8x8xf32> to vector<8xf32>
    %11 = vector.shape_cast %10 : vector<8xf32> to vector<8x1xf32>
    %12 = math.log %11 : vector<8x1xf32>
    %13 = arith.addf %12, %6 : vector<8x1xf32>
    %14 = tpu.iota {dimensions = array<i32: 0>} : vector<8x8xi32>
    %15 = tpu.iota {dimensions = array<i32: 1>} : vector<8x8xi32>
    %c8_i32 = arith.constant 8 : i32
    %16 = arith.muli %arg0, %c8_i32 : i32
    %17 = vector.broadcast %16 : i32 to vector<8x8xi32>
    %18 = arith.addi %14, %17 : vector<8x8xi32>
    %19 = arith.cmpi eq, %15, %18 : vector<8x8xi32>
    %cst_6 = arith.constant 0.000000e+00 : f32
    %20 = vector.broadcast %cst_6 : f32 to vector<8x8xf32>
    %21 = arith.select %19, %4, %20 : vector<8x8xi1>, vector<8x8xf32>
    %cst_7 = arith.constant dense<0.000000e+00> : vector<8xf32>
    %22 = vector.multi_reduction <add>, %21, %cst_7 [1] : vector<8x8xf32> to vector<8xf32>
    %23 = vector.shape_cast %22 : vector<8xf32> to vector<8x1xf32>
    %24 = arith.subf %13, %23 : vector<8x1xf32>
    %c0_8 = arith.constant 0 : index
    %c0_9 = arith.constant 0 : index
    %25 = vector.load %arg3[%c0_8, %c0_9] : memref<8x1xf32, #tpu.memory_space<vmem>>, vector<8x1xf32>
    tpu.vector_store %arg3[%c0_8, %c0_9], %24 {strides = array<i32>} : memref<8x1xf32, #tpu.memory_space<vmem>>, vector<8x1xf32>,
    return
  }
  func.func @transform_0(%arg0: i32) -> (i32, i32) {
    %c0_i32 = arith.constant 0 : i32
    %c0_i32_0 = arith.constant 0 : i32
    return %arg0, %c0_i32 : i32, i32
  }
  func.func @transform_1(%arg0: i32) -> (i32, i32) {
    %c0_i32 = arith.constant 0 : i32
    %c0_i32_0 = arith.constant 0 : i32
    %c0_i32_1 = arith.constant 0 : i32
    return %c0_i32, %c0_i32_0 : i32, i32
  }
  func.func @transform_2(%arg0: i32) -> (i32, i32) {
    %c0_i32 = arith.constant 0 : i32
    %c0_i32_0 = arith.constant 0 : i32
    return %arg0, %c0_i32 : i32, i32
  }
}

</mosaic_0001>

<llo_original>
// kernel: tpu_custom_call.1
$region0: #{tpu_custom_call.1}
  #allocation0 [shape = 'u32[]', space=smem, size = 0x4, offset = 0x4, fixed_abs, tag = 'smem constant byte address 0x4 - core index']
  #allocation1 [shape = 'u32[144,128]{1,0:T(1,128)}', space=vmem, size = 0x12000, scoped, tag = 'internal scratch']
  %s0 = inlined_call_operand.hbm [shape: f32[8,128], index: 0, kind: input, shape index: {}]
  %s1 = inlined_call_operand.hbm [shape: f32[8,128], index: 1, kind: input, shape index: {}]
  %s2 = inlined_call_operand.vmem [shape: f32[8,1], index: 2, kind: output, shape index: {}]
  %s3 = sld [smem:[#allocation0]]
  $region26: #{tpu_custom_call.1} parent=0
    _
  %s5 = ssub.s32 1, %s3
  %s6 = scalar_select 0, %s5, %s3
  $region1: #{tpu_custom_call.1} parent=0
    #allocation2 [shape = 'u8[4096]{0}', space=vmem, size = 0x1000, scoped, tag = 'input window, operand 0, single buffered']
    #allocation3 [shape = 's32[1]{0}', space=sflag, size = 0x4, scoped, tag = 'scoped memory for tpu_custom_call.1']
    #allocation4 [shape = 'u8[4096]{0}', space=vmem, size = 0x1000, scoped, tag = 'input window, operand 1, single buffered']
    #allocation5 [shape = 's32[1]{0}', space=sflag, size = 0x4, scoped, tag = 'scoped memory for tpu_custom_call.1']
    %7 = vsyncpa [#allocation3], 0
    %8 = vsyncpa [#allocation5], 0
    // Predicated region
    $region2: #{tpu_custom_call.1} parent=1 // pred_check
      _
    $region3: #{tpu_custom_call.1} parent=1 // pred_check_branch
      %10 = sbr.rel (0) target = $region5
    $region4: #{tpu_custom_call.1} parent=1 // pred_region
      %s12 = ssub.s32 128, 128
      %13 = vsyncadd [#allocation3], %s12
      %s15 = sshll.u32 [#allocation2], 4
      %s16 = int_to_ptr.vmem [resolvable:$true] %s15
      %18 = dma.hbm_to_vmem [thread:$0]  %s0, 128, %s16, [#allocation3]
    $region5: #{tpu_custom_call.1} parent=1 // pred_fallthru
      _
    // Predicated region
    $region6: #{tpu_custom_call.1} parent=1 // pred_check
      _
    $region7: #{tpu_custom_call.1} parent=1 // pred_check_branch
      %20 = sbr.rel (0) target = $region9
    $region8: #{tpu_custom_call.1} parent=1 // pred_region
      %s22 = ssub.s32 128, 128
      %23 = vsyncadd [#allocation5], %s22
      %s25 = sshll.u32 [#allocation4], 4
      %s26 = int_to_ptr.vmem [resolvable:$true] %s25
      %28 = dma.hbm_to_vmem [thread:$0]  %s1, 128, %s26, [#allocation5]
    $region9: #{tpu_custom_call.1} parent=1 // pred_fallthru
      _
    // Predicated region
    $region10: #{tpu_custom_call.1} parent=1 // pred_check
      _
    $region11: #{tpu_custom_call.1} parent=1 // pred_check_branch
      %30 = sbr.rel (0) target = $region13
    $region12: #{tpu_custom_call.1} parent=1 // pred_region
      %31 = dma.done [#allocation3], 128
    $region13: #{tpu_custom_call.1} parent=1 // pred_fallthru
      _
    // Predicated region
    $region14: #{tpu_custom_call.1} parent=1 // pred_check
      _
    $region15: #{tpu_custom_call.1} parent=1 // pred_check_branch
      %33 = sbr.rel (0) target = $region17
    $region16: #{tpu_custom_call.1} parent=1 // pred_region
      %34 = dma.done [#allocation5], 128
    $region17: #{tpu_custom_call.1} parent=1 // pred_fallthru
      _
    %v35 = vld [vmem:[#allocation2] sm:$0xff]
    %v36 = vld [vmem:[#allocation4] sm:$0xff]
    %v37 = vmul.f32 %v35, 2.0
    %38 = vmatprep.subr.mxu0 0.0
    %39 = vmatpush1.xpose.msra.mxu0 %v36
    %40 = vmatprep.subr.mxu0 0.0
    %41 = vmatpush1.xpose.msra.mxu0 0.0
    %42 = vmatprep.subr.mxu0 0.0
    %43 = vmatpush1.xpose.msra.mxu0 0.0
    %44 = vmatprep.subr.mxu0 0.0
    %45 = vmatpush1.xpose.msra.mxu0 0.0
    %46 = vmatprep.subr.mxu0 0.0
    %47 = vmatpush1.xpose.msra.mxu0 0.0
    %48 = vmatprep.subr.mxu0 0.0
    %49 = vmatpush1.xpose.msra.mxu0 0.0
    %50 = vmatprep.subr.mxu0 0.0
    %51 = vmatpush1.xpose.msra.mxu0 0.0
    %52 = vmatprep.subr.mxu0 0.0
    %53 = vmatpush1.xpose.msra.mxu0 0.0
    %54 = vmatprep.subr.mxu0 0.0
    %55 = vmatpush1.xpose.msra.mxu0 0.0
    %56 = vmatprep.subr.mxu0 0.0
    %57 = vmatpush1.xpose.msra.mxu0 0.0
    %58 = vmatprep.subr.mxu0 0.0
    %59 = vmatpush1.xpose.msra.mxu0 0.0
    %60 = vmatprep.subr.mxu0 0.0
    %61 = vmatpush1.xpose.msra.mxu0 0.0
    %62 = vmatprep.subr.mxu0 0.0
    %63 = vmatpush1.xpose.msra.mxu0 0.0
    %64 = vmatprep.subr.mxu0 0.0
    %65 = vmatpush1.xpose.msra.mxu0 0.0
    %66 = vmatprep.subr.mxu0 0.0
    %67 = vmatpush1.xpose.msra.mxu0 0.0
    %68 = vmatprep.subr.mxu0 0.0
    %69 = vmatpush1.xpose.msra.mxu0 0.0
    %70 = vmatprep.subr.mxu0 0.0
    %71 = vmatpush1.xpose.msra.mxu0 0.0
    %72 = vmatprep.subr.mxu0 0.0
    %73 = vmatpush1.xpose.msra.mxu0 0.0
    %74 = vmatprep.subr.mxu0 0.0
    %75 = vmatpush1.xpose.msra.mxu0 0.0
    %76 = vmatprep.subr.mxu0 0.0
    %77 = vmatpush1.xpose.msra.mxu0 0.0
    %78 = vmatprep.subr.mxu0 0.0
    %79 = vmatpush1.xpose.msra.mxu0 0.0
    %80 = vmatprep.subr.mxu0 0.0
    %81 = vmatpush1.xpose.msra.mxu0 0.0
    %82 = vmatprep.subr.mxu0 0.0
    %83 = vmatpush1.xpose.msra.mxu0 0.0
    %84 = vmatprep.subr.mxu0 0.0
    %85 = vmatpush1.xpose.msra.mxu0 0.0
    %86 = vmatprep.subr.mxu0 0.0
    %87 = vmatpush1.xpose.msra.mxu0 0.0
    %88 = vmatprep.subr.mxu0 0.0
    %89 = vmatpush1.xpose.msra.mxu0 0.0
    %90 = vmatprep.subr.mxu0 0.0
    %91 = vmatpush1.xpose.msra.mxu0 0.0
    %92 = vmatprep.subr.mxu0 0.0
    %93 = vmatpush1.xpose.msra.mxu0 0.0
    %94 = vmatprep.subr.mxu0 0.0
    %95 = vmatpush1.xpose.msra.mxu0 0.0
    %96 = vmatprep.subr.mxu0 0.0
    %97 = vmatpush1.xpose.msra.mxu0 0.0
    %98 = vmatprep.subr.mxu0 0.0
    %99 = vmatpush1.xpose.msra.mxu0 0.0
    %100 = vmatprep.subr.mxu0 0.0
    %101 = vmatpush1.xpose.msra.mxu0 0.0
    %102 = vmatprep.mubr.f32.mxu0 0.0
    %103 = vmatmul.mubr.f32.gmra.mrb[0].mxu0 %v37
    %v104 = vpop.f32.mrb[0].mxu0
    %v105 = vadd.f32 0.0, %v104
    %v106 = vpop.f32.mrb[0].mxu0
    %107 = vdwg.mxu0
    %vm108 = vcmask 64512
    %v109 = vsel %vm108, %v105, -inf
    %110 = vmax.xlane.f32.xlu0 %v109
    %v111 = vpop.xlane.xlu0 %110
    %v112 = vsub.f32 %v105, %v111
    %v113 = vmul.f32 %v112, 1.442695
    %v114 = vpow.pop %v113
    %v115 = vsel %vm108, %v114, 0.0
    %116 = vadd.xlane.f32.xlu0 %v115
    %v117 = vpop.xlane.xlu0 %116
    %v118 = vlog2.pop %v117
    %v119 = vmul.f32 %v118, 0.6931472
    %v120 = vadd.f32 %v119, %v111
    %v121 = vlaneseq
    %v122 = vshrl.u32 %v121, 7
    %v123 = vlaneseq
    %v124 = vand.u32 %v123, 127
    %s125 = smul.u32 0, 8
    %v126 = vstv %s125
    %v127 = vadd.s32 %v122, %v126
    %vm128 = vcmp.eq.s32.totalorder %v124, %v127
    %v129 = vsel %vm128, %v105, 0.0
    %v130 = vsel %vm108, %v129, 0.0
    %131 = vadd.xlane.f32.xlu0 %v130
    %v132 = vpop.xlane.xlu0 %131
    %v133 = vsub.f32 %v120, %v132
    %vm134 = vcmask 7168
    %135 = vst.msk [vmem:[%s2] sm:$0xff] %vm134, %v133
    // Predicated region
    $region18: #{tpu_custom_call.1} parent=1 // pred_check
      _
    $region19: #{tpu_custom_call.1} parent=1 // pred_check_branch
      %137 = sbr.rel (0) target = $region21
    $region20: #{tpu_custom_call.1} parent=1 // pred_region
      _
    $region21: #{tpu_custom_call.1} parent=1 // pred_fallthru
      _
    // Predicated region
    $region22: #{tpu_custom_call.1} parent=1 // pred_check
      _
    $region23: #{tpu_custom_call.1} parent=1 // pred_check_branch
      %139 = sbr.rel (0) target = $region25
    $region24: #{tpu_custom_call.1} parent=1 // pred_region
      _
    $region25: #{tpu_custom_call.1} parent=1 // pred_fallthru
      _
    %140 = vsyncpa [#allocation3], 1
    %141 = vsyncpa [#allocation5], 1

</llo_original>
